<compile_context>
chip_gen: v7x
topology: tpu7x:2x2x1
jax: 0.10.0
libtpu: 0.0.40
codegen_flags: <defaults>
</compile_context>

<pallas_src>
import functools
import math

import jax
import jax.numpy as jnp
from jax import lax
from jax.experimental import pallas as pl
from jax.experimental.pallas import tpu as pltpu


def _round_up(x, m):
    return ((x + m - 1) // m) * m


# ---------------------------------------------------------------------------
# Fast path: VMEM-resident table, one-hot gather on the MXU.
# ---------------------------------------------------------------------------

_FAST_TABLE_BYTES = 4 * 1024 * 1024   # table must comfortably fit in VMEM
_FAST_MAX_VOCAB = 1024                # bound one-hot MXU flops (2*T*V*D per tile)


def _embed_onehot_kernel(ids_ref, table_ref, out_ref, *, vocab, scale):
    ids = ids_ref[...]                                        # (T, 1) int32
    t = ids.shape[0]
    onehot = ids == lax.broadcasted_iota(jnp.int32, (t, vocab), 1)   # (T, V)
    # One-hot row selection on the MXU; accumulate in f32, scale in f32, then cast.
    # TODO(synk): consider precision=HIGHEST for bit-exact f32 selection if needed.
    rows = jnp.dot(onehot.astype(table_ref.dtype), table_ref[...],
                   preferred_element_type=jnp.float32)
    out_ref[...] = (rows * scale).astype(out_ref.dtype)


def _embed_onehot(flat_ids, emb_table, scale):
    n_tok = flat_ids.shape[0]
    V, D = emb_table.shape
    itemsize = jnp.dtype(emb_table.dtype).itemsize

    # Tile height: keep the (T, V) one-hot and the (T, D) output block ~<= 2 MiB each.
    t = min(512,
            max(8, (2 * 1024 * 1024) // max(4 * V, 1)),
            max(8, (2 * 1024 * 1024) // max(D * itemsize, 1)))
    t = min(t, _round_up(n_tok, 8))
    T = max(8, (t // 8) * 8)

    n_tiles = pl.cdiv(n_tok, T)
    n_pad = n_tiles * T
    ids = flat_ids
    if n_pad != n_tok:
        # Pad ids only (token 0 = valid row); padded output rows are clipped by
        # Pallas at the (n_tok, D) output boundary — no post-kernel slice copy.
        ids = jnp.pad(ids, (0, n_pad - n_tok))
    ids = ids.reshape(n_pad, 1)

    return pl.pallas_call(
        functools.partial(_embed_onehot_kernel, vocab=V, scale=scale),
        out_shape=jax.ShapeDtypeStruct((n_tok, D), emb_table.dtype),
        grid=(n_tiles,),
        in_specs=[
            pl.BlockSpec((T, 1), lambda i: (i, 0)),
            pl.BlockSpec((V, D), lambda i: (0, 0)),   # table resident across the grid
        ],
        out_specs=pl.BlockSpec((T, D), lambda i: (i, 0)),
        compiler_params=pltpu.CompilerParams(dimension_semantics=("parallel",)),
    )(ids, emb_table)


# ---------------------------------------------------------------------------
# Gather path: table in HBM, manual row-gather DMAs with a deep rolling window.
# ---------------------------------------------------------------------------

_GATHER_BLOCK_BYTES = 2 * 1024 * 1024   # target (T, D) output block size
_GATHER_WINDOW = 64                     # in-flight row gathers


def _embed_gather_kernel(ids_ref, emb_hbm, out_ref, rows_vmem, sem, *,
                         tokens_per_block, window, scale):
    """Gather `tokens_per_block` embedding rows from HBM, scale, write one block.

    ids_ref   : (n_pad,) int32 token ids in SMEM (scalar prefetch).
    emb_hbm   : (V, D) embedding table, raw HBM ref (memory_space=pl.ANY).
    out_ref   : (T, D) output block in VMEM (auto-pipelined writeback).
    rows_vmem : (T, D) VMEM scratch for the gathered rows.
    sem       : (window,) DMA semaphores.
    """
    base = pl.program_id(0) * tokens_per_block

    def start(t):
        # NOTE: out-of-range token ids are only caught by the default DMA bounds
        # check (hard fault), matching PyTorch's "invalid index is an error".
        pltpu.make_async_copy(
            emb_hbm.at[pl.ds(ids_ref[base + t], 1)],
            rows_vmem.at[pl.ds(t, 1)],
            sem.at[t % window],
        ).start()

    def wait(t):
        # Wait only needs the semaphore slot + transfer size (src row irrelevant).
        pltpu.make_async_copy(
            emb_hbm.at[pl.ds(0, 1)],
            rows_vmem.at[pl.ds(t, 1)],
            sem.at[t % window],
        ).wait()

    # Prime the DMA window: `window` row gathers in flight.
    def prime_body(t, carry):
        start(t)
        return carry

    lax.fori_loop(0, min(window, tokens_per_block), prime_body, 0)

    # Rolling wait + refill: keeps `window` gathers outstanding until the tile drains.
    def roll_body(t, carry):
        wait(t)

        @pl.when(t + window < tokens_per_block)
        def _():
            start(t + window)

        return carry

    lax.fori_loop(0, tokens_per_block, roll_body, 0)

    # Scale in f32 on the VPU and emit one dense (T, D) store; the writeback DMA
    # of this block overlaps the next grid step's gathers via the auto-pipeline.
    out_ref[...] = (rows_vmem[...].astype(jnp.float32) * scale).astype(out_ref.dtype)


def _embed_gather(flat_ids, emb_table, scale):
    n_tok = flat_ids.shape[0]
    V, D = emb_table.shape
    itemsize = jnp.dtype(emb_table.dtype).itemsize

    # Tile height from a byte target: ~2 MiB output block -> (rows scratch +
    # double-buffered output block) ~ 6 MiB, safe under every generation's
    # scoped-VMEM default without touching vmem_limit_bytes.
    t = _GATHER_BLOCK_BYTES // max(D * itemsize, 1)
    t = max(8, min(t, 2048))
    t = min(t, _round_up(n_tok, 8))
    T = max(8, (t // 8) * 8)
    window = max(8, min(_GATHER_WINDOW, T))

    n_tiles = pl.cdiv(n_tok, T)
    n_pad = n_tiles * T
    ids = flat_ids
    if n_pad != n_tok:
        # Pad only the (tiny) id array; the (n_tok, D) output is NOT padded, so
        # there is no extra HBM copy of the dominant data volume.
        ids = jnp.pad(ids, (0, n_pad - n_tok))

    grid_spec = pltpu.PrefetchScalarGridSpec(
        num_scalar_prefetch=1,
        grid=(n_tiles,),
        in_specs=[
            pl.BlockSpec(memory_space=pl.ANY),   # table stays in HBM; manual row DMAs
        ],
        out_specs=pl.BlockSpec((T, D), lambda i, ids: (i, 0)),
        scratch_shapes=[
            pltpu.VMEM((T, D), emb_table.dtype),
            pltpu.SemaphoreType.DMA((window,)),
        ],
    )

    kernel = pl.pallas_call(
        functools.partial(_embed_gather_kernel, tokens_per_block=T,
                          window=window, scale=scale),
        out_shape=jax.ShapeDtypeStruct((n_tok, D), emb_table.dtype),
        grid_spec=grid_spec,
        compiler_params=pltpu.CompilerParams(
            # Token tiles are independent -> v7x's two TensorCores split the grid.
            dimension_semantics=("parallel",),
        ),
    )
    return kernel(ids, emb_table)


# ---------------------------------------------------------------------------
# Public wrapper (matches the PyTorch forward semantics).
# ---------------------------------------------------------------------------

def input_embeddings(x_ids, emb_table, d_model, *, force_path=None):
    """x_ids: integer token ids (any shape); emb_table: (V, D). Returns x.shape + (D,)."""
    V, D = emb_table.shape
    assert D == d_model, "emb_table last dim must equal d_model"
    n_tok = int(math.prod(x_ids.shape))
    flat_ids = x_ids.reshape(n_tok).astype(jnp.int32)
    scale = math.sqrt(float(d_model))

    table_bytes = V * D * jnp.dtype(emb_table.dtype).itemsize
    use_fast = (table_bytes <= _FAST_TABLE_BYTES) and (V <= _FAST_MAX_VOCAB)
    if force_path == "gather":
        use_fast = False
    elif force_path == "onehot":
        use_fast = True

    if use_fast:
        out_flat = _embed_onehot(flat_ids, emb_table, scale)
    else:
        out_flat = _embed_gather(flat_ids, emb_table, scale)
    return out_flat.reshape(*x_ids.shape, D)


if __name__ == "__main__":
    key = jax.random.PRNGKey(0)
    k_emb, k_ids, k_emb2, k_ids2 = jax.random.split(key, 4)

    # Small deterministic setup consistent with the module.
    vocab_size, d_model, B, S = 64, 32, 2, 8
    emb_table = jax.random.normal(k_emb, (vocab_size, d_model), dtype=jnp.float32)
    x_ids = jax.random.randint(k_ids, (B, S), 0, vocab_size, dtype=jnp.int32)
    ref = emb_table[x_ids] * math.sqrt(d_model)

    # 1) Default dispatch -> table-resident one-hot MXU path at these shapes.
    #    (looser tolerance: MXU default precision may round f32 operands to bf16)
    out = jax.block_until_ready(input_embeddings(x_ids, emb_table, d_model))
    assert out.shape == (B, S, d_model)
    assert jnp.allclose(out, ref, rtol=1e-2, atol=1e-2), "fast path mismatch"

    # 2) Same inputs through the HBM row-gather path (exact).
    out_g = jax.block_until_ready(
        input_embeddings(x_ids, emb_table, d_model, force_path="gather"))
    assert jnp.allclose(out_g, ref, atol=1e-5), "gather path mismatch"

    # 3) Slightly larger gather-path check (exercises the full 64-deep DMA window).
    V2, D2, B2, S2 = 1000, 256, 4, 128
    emb2 = jax.random.normal(k_emb2, (V2, D2), dtype=jnp.float32)
    ids2 = jax.random.randint(k_ids2, (B2, S2), 0, V2, dtype=jnp.int32)
    out2 = jax.block_until_ready(
        input_embeddings(ids2, emb2, D2, force_path="gather"))
    ref2 = emb2[ids2] * math.sqrt(D2)
    assert jnp.allclose(out2, ref2, atol=1e-4), "large gather mismatch"

    print("KERNEL_OK")
</pallas_src>

<mosaic_0001>
module attributes {stable_mosaic.version = 11 : i64} {
  func.func @_embed_onehot_kernel(%arg0: i32, %arg1: memref<16x1xi32, #tpu.memory_space<vmem>>, %arg2: memref<64x32xf32, #tpu.memory_space<vmem>>, %arg3: memref<16x32xf32, #tpu.memory_space<vmem>>) attributes {dimension_semantics = [#tpu.dimension_semantics<parallel>], iteration_bounds = array<i64: 1>, scalar_prefetch = 0 : i64, scratch_operands = 0 : i64, tpu.core_type = #tpu.core_type<tc>, window_params = [{transform_indices = @transform_0, window_bounds = array<i64: 16, 1>}, {pipeline_mode = #tpu.pipeline_mode<synchronous>, transform_indices = @transform_1, window_bounds = array<i64: 64, 32>}, {transform_indices = @transform_2, window_bounds = array<i64: 16, 32>}]} {
    %c0 = arith.constant 0 : index
    %c0_0 = arith.constant 0 : index
    %0 = vector.load %arg1[%c0, %c0_0] : memref<16x1xi32, #tpu.memory_space<vmem>>, vector<16x1xi32>
    %1 = tpu.iota {dimensions = array<i32: 1>} : vector<16x64xi32>
    %2 = vector.broadcast %0 : vector<16x1xi32> to vector<16x64xi32>
    %3 = arith.cmpi eq, %2, %1 : vector<16x64xi32>
    %4 = arith.extui %3 : vector<16x64xi1> to vector<16x64xi32>
    %5 = arith.sitofp %4 : vector<16x64xi32> to vector<16x64xf32>
    %c0_1 = arith.constant 0 : index
    %c0_2 = arith.constant 0 : index
    %6 = vector.load %arg2[%c0_1, %c0_2] : memref<64x32xf32, #tpu.memory_space<vmem>>, vector<64x32xf32>
    %cst = arith.constant dense<0.000000e+00> : vector<16x32xf32>
    %7 = tpu.matmul %5, %6, %cst {dimension_numbers = #tpu.dot_dimension_numbers<[1], [0], [0], [1], [0, 0, 1, 1], [], []>} : vector<16x64xf32>, vector<64x32xf32>, vector<16x32xf32> -> vector<16x32xf32>
    %cst_3 = arith.constant 5.65685415 : f32
    %8 = vector.broadcast %cst_3 : f32 to vector<16x32xf32>
    %9 = arith.mulf %7, %8 : vector<16x32xf32>
    %c0_4 = arith.constant 0 : index
    %c0_5 = arith.constant 0 : index
    %10 = vector.load %arg3[%c0_4, %c0_5] : memref<16x32xf32, #tpu.memory_space<vmem>>, vector<16x32xf32>
    tpu.vector_store %arg3[%c0_4, %c0_5], %9 {strides = array<i32>} : memref<16x32xf32, #tpu.memory_space<vmem>>, vector<16x32xf32>,
    return
  }
  func.func @transform_0(%arg0: i32) -> (i32, i32) {
    %c0_i32 = arith.constant 0 : i32
    %c0_i32_0 = arith.constant 0 : i32
    return %arg0, %c0_i32 : i32, i32
  }
  func.func @transform_1(%arg0: i32) -> (i32, i32) {
    %c0_i32 = arith.constant 0 : i32
    %c0_i32_0 = arith.constant 0 : i32
    %c0_i32_1 = arith.constant 0 : i32
    return %c0_i32, %c0_i32_0 : i32, i32
  }
  func.func @transform_2(%arg0: i32) -> (i32, i32) {
    %c0_i32 = arith.constant 0 : i32
    %c0_i32_0 = arith.constant 0 : i32
    return %arg0, %c0_i32 : i32, i32
  }
}

</mosaic_0001>

<llo_original>
// kernel: tpu_custom_call.1
$region0: #{tpu_custom_call.1}
  #allocation0 [shape = 'u32[]', space=smem, size = 0x4, offset = 0x4, fixed_abs, tag = 'smem constant byte address 0x4 - core index']
  #allocation1 [shape = 'u32[144,128]{1,0:T(1,128)}', space=vmem, size = 0x12000, scoped, tag = 'internal scratch']
  %s0 = inlined_call_operand.vmem [shape: s32[16,1], index: 0, kind: input, shape index: {}]
  %s1 = inlined_call_operand.vmem [shape: f32[64,32], index: 1, kind: input, shape index: {}]
  %s2 = inlined_call_operand.hbm [shape: f32[16,32], index: 2, kind: output, shape index: {}]
  %s3 = sld [smem:[#allocation0]]
  $region18: #{tpu_custom_call.1} parent=0
    _
  %s5 = ssub.s32 1, %s3
  %s6 = scalar_select 0, %s5, %s3
  $region1: #{tpu_custom_call.1} parent=0
    #allocation2 [shape = 'u8[8192]{0}', space=vmem, size = 0x2000, scoped, tag = 'output window, operand 0, single buffered']
    #allocation3 [shape = 's32[1]{0}', space=sflag, size = 0x4, scoped, tag = 'scoped memory for tpu_custom_call.1']
    %7 = vsyncpa [#allocation3], 0
    // Predicated region
    $region2: #{tpu_custom_call.1} parent=1 // pred_check
      _
    $region3: #{tpu_custom_call.1} parent=1 // pred_check_branch
      %9 = sbr.rel (0) target = $region5
    $region4: #{tpu_custom_call.1} parent=1 // pred_region
      _
    $region5: #{tpu_custom_call.1} parent=1 // pred_fallthru
      _
    // Predicated region
    $region6: #{tpu_custom_call.1} parent=1 // pred_check
      _
    $region7: #{tpu_custom_call.1} parent=1 // pred_check_branch
      %11 = sbr.rel (0) target = $region9
    $region8: #{tpu_custom_call.1} parent=1 // pred_region
      _
    $region9: #{tpu_custom_call.1} parent=1 // pred_fallthru
      _
    %v12 = vld [vmem:[%s0] sm:$0xff]
    %v13 = vld [vmem:[%s0 + $0x8] sm:$0xff]
    %v14 = vlaneseq
    %v15 = vand.u32 %v14, 127
    %16 = vset.pattern.permute.xlu0 0
    %17 = vperm.xlu0 %16, %v12
    %v18 = vpop.permute.xlu0 %17
    %19 = vset.pattern.permute.xlu0 0
    %20 = vperm.xlu0 %19, %v13
    %v21 = vpop.permute.xlu0 %20
    %vm22 = vcmp.eq.s32.totalorder %v18, %v15
    %vm23 = vcmp.eq.s32.totalorder %v21, %v15
    %v24 = vsel %vm22, 1, 0
    %v25 = vsel %vm23, 1, 0
    %v26 = vcvt.s32.f32 %v24
    %v27 = vcvt.s32.f32 %v25
    %v28 = vld [vmem:[%s1] sm:$0xff]
    %v29 = vld [vmem:[%s1 + $0x8] sm:$0xff]
    %v30 = vld [vmem:[%s1 + $0x10] sm:$0xff]
    %v31 = vld [vmem:[%s1 + $0x18] sm:$0xff]
    %v32 = vld [vmem:[%s1 + $0x20] sm:$0xff]
    %v33 = vld [vmem:[%s1 + $0x28] sm:$0xff]
    %v34 = vld [vmem:[%s1 + $0x30] sm:$0xff]
    %v35 = vld [vmem:[%s1 + $0x38] sm:$0xff]
    %vm36 = vcmask 523264
    %v38 = vsel %vm36, %v26, 0
    %v41 = vsel %vm36, %v27, 0
    %43 = vmatprep.subr.mxu0 0.0
    %44 = vmatpush1.msra.mxu0 %v28
    %45 = vmatprep.subr.mxu0 0.0
    %46 = vmatpush1.msra.mxu0 %v29
    %47 = vmatprep.subr.mxu0 0.0
    %48 = vmatpush1.msra.mxu0 %v30
    %49 = vmatprep.subr.mxu0 0.0
    %50 = vmatpush1.msra.mxu0 %v31
    %51 = vmatprep.subr.mxu0 0.0
    %52 = vmatpush1.msra.mxu0 %v32
    %53 = vmatprep.subr.mxu0 0.0
    %54 = vmatpush1.msra.mxu0 %v33
    %55 = vmatprep.subr.mxu0 0.0
    %56 = vmatpush1.msra.mxu0 %v34
    %57 = vmatprep.subr.mxu0 0.0
    %58 = vmatpush1.msra.mxu0 %v35
    %59 = vmatprep.subr.mxu0 0.0
    %60 = vmatpush1.msra.mxu0 0.0
    %61 = vmatprep.subr.mxu0 0.0
    %62 = vmatpush1.msra.mxu0 0.0
    %63 = vmatprep.subr.mxu0 0.0
    %64 = vmatpush1.msra.mxu0 0.0
    %65 = vmatprep.subr.mxu0 0.0
    %66 = vmatpush1.msra.mxu0 0.0
    %67 = vmatprep.subr.mxu0 0.0
    %68 = vmatpush1.msra.mxu0 0.0
    %69 = vmatprep.subr.mxu0 0.0
    %70 = vmatpush1.msra.mxu0 0.0
    %71 = vmatprep.subr.mxu0 0.0
    %72 = vmatpush1.msra.mxu0 0.0
    %73 = vmatprep.subr.mxu0 0.0
    %74 = vmatpush1.msra.mxu0 0.0
    %75 = vmatprep.subr.mxu0 0.0
    %76 = vmatpush1.msra.mxu0 0.0
    %77 = vmatprep.subr.mxu0 0.0
    %78 = vmatpush1.msra.mxu0 0.0
    %79 = vmatprep.subr.mxu0 0.0
    %80 = vmatpush1.msra.mxu0 0.0
    %81 = vmatprep.subr.mxu0 0.0
    %82 = vmatpush1.msra.mxu0 0.0
    %83 = vmatprep.subr.mxu0 0.0
    %84 = vmatpush1.msra.mxu0 0.0
    %85 = vmatprep.subr.mxu0 0.0
    %86 = vmatpush1.msra.mxu0 0.0
    %87 = vmatprep.subr.mxu0 0.0
    %88 = vmatpush1.msra.mxu0 0.0
    %89 = vmatprep.subr.mxu0 0.0
    %90 = vmatpush1.msra.mxu0 0.0
    %91 = vmatprep.subr.mxu0 0.0
    %92 = vmatpush1.msra.mxu0 0.0
    %93 = vmatprep.subr.mxu0 0.0
    %94 = vmatpush1.msra.mxu0 0.0
    %95 = vmatprep.subr.mxu0 0.0
    %96 = vmatpush1.msra.mxu0 0.0
    %97 = vmatprep.subr.mxu0 0.0
    %98 = vmatpush1.msra.mxu0 0.0
    %99 = vmatprep.subr.mxu0 0.0
    %100 = vmatpush1.msra.mxu0 0.0
    %101 = vmatprep.subr.mxu0 0.0
    %102 = vmatpush1.msra.mxu0 0.0
    %103 = vmatprep.subr.mxu0 0.0
    %104 = vmatpush1.msra.mxu0 0.0
    %105 = vmatprep.subr.mxu0 0.0
    %106 = vmatpush1.msra.mxu0 0.0
    %107 = vmatprep.mubr.f32.mxu0 0.0
    %108 = vmatmul.mubr.f32.gmra.mrb[0].mxu0 %v38
    %v109 = vpop.f32.mrb[0].mxu0
    %v110 = vadd.f32 0.0, %v109
    %v111 = vpop.f32.mrb[0].mxu0
    %112 = vmatprep.mubr.f32.mxu0 0.0
    %113 = vmatmul.mubr.f32.gmra.mrb[0].mxu0 %v41
    %v114 = vpop.f32.mrb[0].mxu0
    %v115 = vadd.f32 0.0, %v114
    %v116 = vpop.f32.mrb[0].mxu0
    %117 = vdwg.mxu0
    %v118 = vmul.f32 %v110, 5.656854
    %v119 = vmul.f32 %v115, 5.656854
    %vm120 = vcmask 261120
    %121 = vst.msk [vmem:[#allocation2] sm:$0xff] %vm120, %v118
    %122 = vst.msk [vmem:[#allocation2 + $0x8] sm:$0xff] %vm120, %v119
    // Predicated region
    $region10: #{tpu_custom_call.1} parent=1 // pred_check
      _
    $region11: #{tpu_custom_call.1} parent=1 // pred_check_branch
      %124 = sbr.rel (0) target = $region13
    $region12: #{tpu_custom_call.1} parent=1 // pred_region
      %s126 = ssub.s32 256, 256
      %127 = vsyncadd [#allocation3], %s126
      %s128 = sshll.u32 [#allocation2], 4
      %s129 = int_to_ptr.vmem [resolvable:$true] %s128
      %134 = dma.vmem_to_hbm [thread:$0]  %s129, 256, %s2, [#allocation3], 128, 128, 8
    $region13: #{tpu_custom_call.1} parent=1 // pred_fallthru
      _
    // Predicated region
    $region14: #{tpu_custom_call.1} parent=1 // pred_check
      _
    $region15: #{tpu_custom_call.1} parent=1 // pred_check_branch
      %136 = sbr.rel (0) target = $region17
    $region16: #{tpu_custom_call.1} parent=1 // pred_region
      %137 = dma.done [#allocation3], 256
    $region17: #{tpu_custom_call.1} parent=1 // pred_fallthru
      _
    %138 = vsyncpa [#allocation3], 1

</llo_original>
